<compile_context>
chip_gen: v7x
topology: tpu7x:2x2x1
jax: 0.10.0
libtpu: 0.0.40
codegen_flags: <defaults>
</compile_context>

<pallas_src>
import functools
import math

import jax
import jax.numpy as jnp
from jax.experimental import pallas as pl
from jax.experimental.pallas import tpu as pltpu


def _round_up(x, m):
    return ((x + m - 1) // m) * m


def _ann_kernel(x_ref,
                w1_ref, b1_ref,
                w2_ref, b2_ref,
                w3_ref, b3_ref,
                w4_ref, b4_ref,
                w5_ref, b5_ref,
                o_ref,
                *, compute_dtype):
    """Fused 5-layer MLP on one batch tile.

    Feature-major layout: activations are (features, TILE_M), batch on lanes.
    Hidden weights are PyTorch-native (out_features, in_features); biases are
    (out_features, 1).  The last layer's weight is passed pre-transposed as
    (32, 1) so it can be applied on the VPU/XLU.
    """
    def linear(h, w_ref, b_ref):
        w = w_ref[...].astype(compute_dtype)
        y = jnp.dot(w, h, preferred_element_type=jnp.float32) + b_ref[...]
        y = jnp.maximum(y, 0.0)                      # ReLU
        return y.astype(compute_dtype)

    h = x_ref[...].astype(compute_dtype)             # (5,   TILE_M)
    h = linear(h, w1_ref, b1_ref)                    # (128, TILE_M)
    h = linear(h, w2_ref, b2_ref)                    # (128, TILE_M)
    h = linear(h, w3_ref, b3_ref)                    # (64,  TILE_M)
    h = linear(h, w4_ref, b4_ref)                    # (32,  TILE_M)

    # Final 32 -> 1 layer off the MXU: broadcast-multiply (VPU) + sublane
    # reduce (XLU).  w5_ref is (32, 1), b5_ref is (1, 1).
    y = jnp.sum(h.astype(jnp.float32) * w5_ref[...], axis=0, keepdims=True)
    o_ref[...] = (y + b5_ref[...]).astype(o_ref.dtype)   # (1, TILE_M) lane-dense


def ann_forward(x, params, *, tile_m=512, use_bf16=False):
    """x: (batch, input_dim) f32. params: list of (W, b), W (out, in), b (out,)."""
    batch, in_dim = x.shape
    compute_dtype = jnp.bfloat16 if use_bf16 else jnp.float32

    # Batch tiling along the 128-lane axis.
    tile_m = max(128, min(tile_m, _round_up(batch, 128)))
    num_tiles = pl.cdiv(batch, tile_m)
    padded = num_tiles * tile_m

    # Feature-major input (input_dim, padded_batch); padded columns are zeros
    # and get sliced off after the kernel.
    x_t = jnp.zeros((in_dim, padded), x.dtype).at[:, :batch].set(x.T)

    flat = []
    param_specs = []
    n_layers = len(params)
    for li, (w, b) in enumerate(params):
        out_f, in_f = w.shape
        if li == n_layers - 1:
            # Final (1, 32) layer is applied on the VPU/XLU; pass W as (32, 1).
            w = w.T
        elif use_bf16:
            w = w.astype(jnp.bfloat16)               # f32 accumulation kept in-kernel
        b = b.reshape(out_f, 1).astype(jnp.float32)
        flat.extend([w, b])
        # Full-shape blocks + constant index_map -> DMA'd once, resident in
        # VMEM for every batch tile.
        param_specs.append(pl.BlockSpec(w.shape, lambda i: (0, 0)))
        param_specs.append(pl.BlockSpec(b.shape, lambda i: (0, 0)))

    kernel = functools.partial(_ann_kernel, compute_dtype=compute_dtype)
    out_t = pl.pallas_call(
        kernel,
        out_shape=jax.ShapeDtypeStruct((1, padded), jnp.float32),
        grid=(num_tiles,),
        in_specs=[pl.BlockSpec((in_dim, tile_m), lambda i: (0, i))] + param_specs,
        out_specs=pl.BlockSpec((1, tile_m), lambda i: (0, i)),
        compiler_params=pltpu.CompilerParams(
            dimension_semantics=("parallel",),        # v7x: shard tiles across 2 TCs
            vmem_limit_bytes=32 * 1024 * 1024,        # headroom; live set << 32 MiB
        ),
    )(x_t, *flat)
    return out_t[0, :batch].reshape(batch, 1)


def init_params(key, dims):
    """nn.Linear-style init: W (out, in), b (out,), U(-1/sqrt(fan_in), +1/sqrt(fan_in))."""
    params = []
    for i in range(len(dims) - 1):
        fan_in, fan_out = dims[i], dims[i + 1]
        key, kw, kb = jax.random.split(key, 3)
        bound = 1.0 / math.sqrt(fan_in)
        w = jax.random.uniform(kw, (fan_out, fan_in), jnp.float32, -bound, bound)
        b = jax.random.uniform(kb, (fan_out,), jnp.float32, -bound, bound)
        params.append((w, b))
    return params


def ann_reference(x, params):
    h = x
    n = len(params)
    for i, (w, b) in enumerate(params):
        h = h @ w.T + b
        if i < n - 1:
            h = jnp.maximum(h, 0.0)
    return h


if __name__ == "__main__":
    input_dim = 5
    hidden_dim = [128, 128, 64, 32]
    dims = [input_dim] + hidden_dim + [1]
    batch = 200  # small, but exercises batch padding and a 2-step grid (tile_m=128)

    key = jax.random.PRNGKey(0)
    key, kx = jax.random.split(key)
    x = jax.random.normal(kx, (batch, input_dim), jnp.float32)
    params = init_params(key, dims)

    ref = ann_reference(x, params)

    # f32 path (matches the PyTorch-style reference).
    out = jax.block_until_ready(ann_forward(x, params, tile_m=128))
    assert out.shape == (batch, 1), out.shape
    assert jnp.allclose(out, ref, atol=1e-4, rtol=1e-4), (
        f"f32 max abs diff {jnp.max(jnp.abs(out - ref))}")

    # bf16-matmul path (v6e/v7x MXU optimization; f32 accumulation, loose tol).
    out_bf16 = jax.block_until_ready(ann_forward(x, params, tile_m=128, use_bf16=True))
    assert jnp.allclose(out_bf16, ref, atol=1e-1, rtol=1e-1), (
        f"bf16 max abs diff {jnp.max(jnp.abs(out_bf16 - ref))}")

    print("KERNEL_OK")
</pallas_src>

<mosaic_0001>
module attributes {stable_mosaic.version = 11 : i64} {
  func.func @_ann_kernel(%arg0: i32, %arg1: memref<5x128xf32, #tpu.memory_space<vmem>>, %arg2: memref<128x5xf32, #tpu.memory_space<vmem>>, %arg3: memref<128x1xf32, #tpu.memory_space<vmem>>, %arg4: memref<128x128xf32, #tpu.memory_space<vmem>>, %arg5: memref<128x1xf32, #tpu.memory_space<vmem>>, %arg6: memref<64x128xf32, #tpu.memory_space<vmem>>, %arg7: memref<64x1xf32, #tpu.memory_space<vmem>>, %arg8: memref<32x64xf32, #tpu.memory_space<vmem>>, %arg9: memref<32x1xf32, #tpu.memory_space<vmem>>, %arg10: memref<32x1xf32, #tpu.memory_space<vmem>>, %arg11: memref<1x1xf32, #tpu.memory_space<vmem>>, %arg12: memref<1x128xf32, #tpu.memory_space<vmem>>) attributes {dimension_semantics = [#tpu.dimension_semantics<parallel>], iteration_bounds = array<i64: 2>, scalar_prefetch = 0 : i64, scratch_operands = 0 : i64, tpu.core_type = #tpu.core_type<tc>, window_params = [{transform_indices = @transform_0, window_bounds = array<i64: 5, 128>}, {pipeline_mode = #tpu.pipeline_mode<synchronous>, transform_indices = @transform_1, window_bounds = array<i64: 128, 5>}, {pipeline_mode = #tpu.pipeline_mode<synchronous>, transform_indices = @transform_2, window_bounds = array<i64: 128, 1>}, {pipeline_mode = #tpu.pipeline_mode<synchronous>, transform_indices = @transform_3, window_bounds = array<i64: 128, 128>}, {pipeline_mode = #tpu.pipeline_mode<synchronous>, transform_indices = @transform_4, window_bounds = array<i64: 128, 1>}, {pipeline_mode = #tpu.pipeline_mode<synchronous>, transform_indices = @transform_5, window_bounds = array<i64: 64, 128>}, {pipeline_mode = #tpu.pipeline_mode<synchronous>, transform_indices = @transform_6, window_bounds = array<i64: 64, 1>}, {pipeline_mode = #tpu.pipeline_mode<synchronous>, transform_indices = @transform_7, window_bounds = array<i64: 32, 64>}, {pipeline_mode = #tpu.pipeline_mode<synchronous>, transform_indices = @transform_8, window_bounds = array<i64: 32, 1>}, {pipeline_mode = #tpu.pipeline_mode<synchronous>, transform_indices = @transform_9, window_bounds = array<i64: 32, 1>}, {pipeline_mode = #tpu.pipeline_mode<synchronous>, transform_indices = @transform_10, window_bounds = array<i64: 1, 1>}, {transform_indices = @transform_11, window_bounds = array<i64: 1, 128>}]} {
    %c0 = arith.constant 0 : index
    %c0_0 = arith.constant 0 : index
    %0 = vector.load %arg1[%c0, %c0_0] : memref<5x128xf32, #tpu.memory_space<vmem>>, vector<5x128xf32>
    %c0_1 = arith.constant 0 : index
    %c0_2 = arith.constant 0 : index
    %1 = vector.load %arg2[%c0_1, %c0_2] : memref<128x5xf32, #tpu.memory_space<vmem>>, vector<128x5xf32>
    %cst = arith.constant dense<0.000000e+00> : vector<128x128xf32>
    %2 = tpu.matmul %1, %0, %cst {dimension_numbers = #tpu.dot_dimension_numbers<[1], [0], [0], [1], [0, 0, 1, 1], [], []>} : vector<128x5xf32>, vector<5x128xf32>, vector<128x128xf32> -> vector<128x128xf32>
    %c0_3 = arith.constant 0 : index
    %c0_4 = arith.constant 0 : index
    %3 = vector.load %arg3[%c0_3, %c0_4] : memref<128x1xf32, #tpu.memory_space<vmem>>, vector<128x1xf32>
    %4 = vector.broadcast %3 : vector<128x1xf32> to vector<128x128xf32>
    %5 = arith.addf %2, %4 : vector<128x128xf32>
    %cst_5 = arith.constant 0.000000e+00 : f32
    %6 = vector.broadcast %cst_5 : f32 to vector<128x128xf32>
    %7 = arith.maximumf %5, %6 : vector<128x128xf32>
    %c0_6 = arith.constant 0 : index
    %c0_7 = arith.constant 0 : index
    %8 = vector.load %arg4[%c0_6, %c0_7] : memref<128x128xf32, #tpu.memory_space<vmem>>, vector<128x128xf32>
    %cst_8 = arith.constant dense<0.000000e+00> : vector<128x128xf32>
    %9 = tpu.matmul %8, %7, %cst_8 {dimension_numbers = #tpu.dot_dimension_numbers<[1], [0], [0], [1], [0, 0, 1, 1], [], []>} : vector<128x128xf32>, vector<128x128xf32>, vector<128x128xf32> -> vector<128x128xf32>
    %c0_9 = arith.constant 0 : index
    %c0_10 = arith.constant 0 : index
    %10 = vector.load %arg5[%c0_9, %c0_10] : memref<128x1xf32, #tpu.memory_space<vmem>>, vector<128x1xf32>
    %11 = vector.broadcast %10 : vector<128x1xf32> to vector<128x128xf32>
    %12 = arith.addf %9, %11 : vector<128x128xf32>
    %cst_11 = arith.constant 0.000000e+00 : f32
    %13 = vector.broadcast %cst_11 : f32 to vector<128x128xf32>
    %14 = arith.maximumf %12, %13 : vector<128x128xf32>
    %c0_12 = arith.constant 0 : index
    %c0_13 = arith.constant 0 : index
    %15 = vector.load %arg6[%c0_12, %c0_13] : memref<64x128xf32, #tpu.memory_space<vmem>>, vector<64x128xf32>
    %cst_14 = arith.constant dense<0.000000e+00> : vector<64x128xf32>
    %16 = tpu.matmul %15, %14, %cst_14 {dimension_numbers = #tpu.dot_dimension_numbers<[1], [0], [0], [1], [0, 0, 1, 1], [], []>} : vector<64x128xf32>, vector<128x128xf32>, vector<64x128xf32> -> vector<64x128xf32>
    %c0_15 = arith.constant 0 : index
    %c0_16 = arith.constant 0 : index
    %17 = vector.load %arg7[%c0_15, %c0_16] : memref<64x1xf32, #tpu.memory_space<vmem>>, vector<64x1xf32>
    %18 = vector.broadcast %17 : vector<64x1xf32> to vector<64x128xf32>
    %19 = arith.addf %16, %18 : vector<64x128xf32>
    %cst_17 = arith.constant 0.000000e+00 : f32
    %20 = vector.broadcast %cst_17 : f32 to vector<64x128xf32>
    %21 = arith.maximumf %19, %20 : vector<64x128xf32>
    %c0_18 = arith.constant 0 : index
    %c0_19 = arith.constant 0 : index
    %22 = vector.load %arg8[%c0_18, %c0_19] : memref<32x64xf32, #tpu.memory_space<vmem>>, vector<32x64xf32>
    %cst_20 = arith.constant dense<0.000000e+00> : vector<32x128xf32>
    %23 = tpu.matmul %22, %21, %cst_20 {dimension_numbers = #tpu.dot_dimension_numbers<[1], [0], [0], [1], [0, 0, 1, 1], [], []>} : vector<32x64xf32>, vector<64x128xf32>, vector<32x128xf32> -> vector<32x128xf32>
    %c0_21 = arith.constant 0 : index
    %c0_22 = arith.constant 0 : index
    %24 = vector.load %arg9[%c0_21, %c0_22] : memref<32x1xf32, #tpu.memory_space<vmem>>, vector<32x1xf32>
    %25 = vector.broadcast %24 : vector<32x1xf32> to vector<32x128xf32>
    %26 = arith.addf %23, %25 : vector<32x128xf32>
    %cst_23 = arith.constant 0.000000e+00 : f32
    %27 = vector.broadcast %cst_23 : f32 to vector<32x128xf32>
    %28 = arith.maximumf %26, %27 : vector<32x128xf32>
    %c0_24 = arith.constant 0 : index
    %c0_25 = arith.constant 0 : index
    %29 = vector.load %arg10[%c0_24, %c0_25] : memref<32x1xf32, #tpu.memory_space<vmem>>, vector<32x1xf32>
    %30 = vector.broadcast %29 : vector<32x1xf32> to vector<32x128xf32>
    %31 = arith.mulf %28, %30 : vector<32x128xf32>
    %cst_26 = arith.constant dense<0.000000e+00> : vector<128xf32>
    %32 = vector.multi_reduction <add>, %31, %cst_26 [0] : vector<32x128xf32> to vector<128xf32>
    %33 = vector.shape_cast %32 : vector<128xf32> to vector<1x128xf32>
    %c0_27 = arith.constant 0 : index
    %c0_28 = arith.constant 0 : index
    %34 = vector.load %arg11[%c0_27, %c0_28] : memref<1x1xf32, #tpu.memory_space<vmem>>, vector<1x1xf32>
    %35 = vector.broadcast %34 : vector<1x1xf32> to vector<1x128xf32>
    %36 = arith.addf %33, %35 : vector<1x128xf32>
    %c0_29 = arith.constant 0 : index
    %c0_30 = arith.constant 0 : index
    %37 = vector.load %arg12[%c0_29, %c0_30] : memref<1x128xf32, #tpu.memory_space<vmem>>, vector<1x128xf32>
    tpu.vector_store %arg12[%c0_29, %c0_30], %36 {strides = array<i32>} : memref<1x128xf32, #tpu.memory_space<vmem>>, vector<1x128xf32>,
    return
  }
  func.func @transform_0(%arg0: i32) -> (i32, i32) {
    %c0_i32 = arith.constant 0 : i32
    %c0_i32_0 = arith.constant 0 : i32
    return %c0_i32, %arg0 : i32, i32
  }
  func.func @transform_1(%arg0: i32) -> (i32, i32) {
    %c0_i32 = arith.constant 0 : i32
    %c0_i32_0 = arith.constant 0 : i32
    %c0_i32_1 = arith.constant 0 : i32
    return %c0_i32, %c0_i32_0 : i32, i32
  }
  func.func @transform_2(%arg0: i32) -> (i32, i32) {
    %c0_i32 = arith.constant 0 : i32
    %c0_i32_0 = arith.constant 0 : i32
    %c0_i32_1 = arith.constant 0 : i32
    return %c0_i32, %c0_i32_0 : i32, i32
  }
  func.func @transform_3(%arg0: i32) -> (i32, i32) {
    %c0_i32 = arith.constant 0 : i32
    %c0_i32_0 = arith.constant 0 : i32
    %c0_i32_1 = arith.constant 0 : i32
    return %c0_i32, %c0_i32_0 : i32, i32
  }
  func.func @transform_4(%arg0: i32) -> (i32, i32) {
    %c0_i32 = arith.constant 0 : i32
    %c0_i32_0 = arith.constant 0 : i32
    %c0_i32_1 = arith.constant 0 : i32
    return %c0_i32, %c0_i32_0 : i32, i32
  }
  func.func @transform_5(%arg0: i32) -> (i32, i32) {
    %c0_i32 = arith.constant 0 : i32
    %c0_i32_0 = arith.constant 0 : i32
    %c0_i32_1 = arith.constant 0 : i32
    return %c0_i32, %c0_i32_0 : i32, i32
  }
  func.func @transform_6(%arg0: i32) -> (i32, i32) {
    %c0_i32 = arith.constant 0 : i32
    %c0_i32_0 = arith.constant 0 : i32
    %c0_i32_1 = arith.constant 0 : i32
    return %c0_i32, %c0_i32_0 : i32, i32
  }
  func.func @transform_7(%arg0: i32) -> (i32, i32) {
    %c0_i32 = arith.constant 0 : i32
    %c0_i32_0 = arith.constant 0 : i32
    %c0_i32_1 = arith.constant 0 : i32
    return %c0_i32, %c0_i32_0 : i32, i32
  }
  func.func @transform_8(%arg0: i32) -> (i32, i32) {
    %c0_i32 = arith.constant 0 : i32
    %c0_i32_0 = arith.constant 0 : i32
    %c0_i32_1 = arith.constant 0 : i32
    return %c0_i32, %c0_i32_0 : i32, i32
  }
  func.func @transform_9(%arg0: i32) -> (i32, i32) {
    %c0_i32 = arith.constant 0 : i32
    %c0_i32_0 = arith.constant 0 : i32
    %c0_i32_1 = arith.constant 0 : i32
    return %c0_i32, %c0_i32_0 : i32, i32
  }
  func.func @transform_10(%arg0: i32) -> (i32, i32) {
    %c0_i32 = arith.constant 0 : i32
    %c0_i32_0 = arith.constant 0 : i32
    %c0_i32_1 = arith.constant 0 : i32
    return %c0_i32, %c0_i32_0 : i32, i32
  }
  func.func @transform_11(%arg0: i32) -> (i32, i32) {
    %c0_i32 = arith.constant 0 : i32
    %c0_i32_0 = arith.constant 0 : i32
    return %c0_i32, %arg0 : i32, i32
  }
}

</mosaic_0001>

<llo_original>
// kernel: tpu_custom_call.1
$region0: #{tpu_custom_call.1}
  #allocation0 [shape = 'u32[]', space=smem, size = 0x4, offset = 0x4, fixed_abs, tag = 'smem constant byte address 0x4 - core index']
  #allocation1 [shape = 'u32[144,128]{1,0:T(1,128)}', space=vmem, size = 0x12000, scoped, tag = 'internal scratch']
  #allocation2 [shape = 'f32[1,1]{1,0:T(1,128)S(1)}', space=vmem, size = 0x200, scoped, tag = 'scoped memory for tpu_custom_call.1']
  %s0 = inlined_call_operand.vmem [shape: f32[5,256], index: 0, kind: input, shape index: {}]
  %s1 = inlined_call_operand.vmem [shape: f32[128,5], index: 1, kind: input, shape index: {}]
  %s2 = inlined_call_operand.vmem [shape: f32[128,1], index: 2, kind: input, shape index: {}]
  %s3 = inlined_call_operand.vmem [shape: f32[128,128], index: 3, kind: input, shape index: {}]
  %s4 = inlined_call_operand.vmem [shape: f32[128,1], index: 4, kind: input, shape index: {}]
  %s5 = inlined_call_operand.vmem [shape: f32[64,128], index: 5, kind: input, shape index: {}]
  %s6 = inlined_call_operand.vmem [shape: f32[64,1], index: 6, kind: input, shape index: {}]
  %s7 = inlined_call_operand.vmem [shape: f32[32,64], index: 7, kind: input, shape index: {}]
  %s8 = inlined_call_operand.vmem [shape: f32[32,1], index: 8, kind: input, shape index: {}]
  %s9 = inlined_call_operand.vmem [shape: f32[32,1], index: 9, kind: input, shape index: {}]
  %s10 = inlined_call_operand.<no memory space> [shape: f32[1,1], index: 10, kind: input, shape index: {}]
  %s11 = inlined_call_operand.hbm [shape: f32[1,256], index: 11, kind: output, shape index: {}]
  %s12 = sld [smem:[#allocation0]]
  $region77: #{tpu_custom_call.1} parent=0
    _
  %s14 = ssub.s32 1, %s12
  %s15 = scalar_select 0, %s14, %s12
  %v16 = vstv %s10
  %17 = vst [vmem:[#allocation2] sm:$0x1] %v16
  $region1: #{tpu_custom_call.1} parent=0
    #allocation3 [shape = 'u8[1024]{0}', space=vmem, size = 0x400, scoped, tag = 'output window, operand 0']
    #allocation4 [shape = 's32[2]{0}', space=sflag, size = 0x8, scoped, tag = 'scoped memory for tpu_custom_call.1']
    %18 = vsyncpa [#allocation4], 0
    %s19 = scalar_lea.sflag [#allocation4], 1
    %20 = vsyncpa %s19, 0
    loop: start=0, step=1, limit=4
    $region2: #{tpu_custom_call.1} parent=1 // loop_pre_header
      _
    $region3: #{tpu_custom_call.1} parent=1 // loop_header
      %s22 = sphi 0, %s26
      %p23 = scmp.ge.s32.totalorder %s22, 4
      %s32 = sphi 0, %s34
      %s35 = sphi 0, %s32
      %s36 = sphi 0, %s35
      %s52 = sphi 0, %s36
      %s56 = sphi 0, %s56
      %s58 = sphi 0, %s56
      %s59 = sphi 0, %s58
      %s73 = sphi 0, %s59
      %s77 = sphi 0, %s77
      %s79 = sphi 0, %s77
      %s80 = sphi 0, %s79
      %s94 = sphi 0, %s80
      %s98 = sphi 0, %s98
      %s100 = sphi 0, %s98
      %s101 = sphi 0, %s100
      %s115 = sphi 0, %s101
      %s119 = sphi 0, %s119
      %s121 = sphi 0, %s119
      %s122 = sphi 0, %s121
      %s136 = sphi 0, %s122
      %s140 = sphi 0, %s140
      %s142 = sphi 0, %s140
      %s143 = sphi 0, %s142
      %s157 = sphi 0, %s143
      %s161 = sphi 0, %s161
      %s163 = sphi 0, %s161
      %s164 = sphi 0, %s163
      %s178 = sphi 0, %s164
      %s182 = sphi 0, %s182
      %s184 = sphi 0, %s182
      %s185 = sphi 0, %s184
      %s199 = sphi 0, %s185
      %s203 = sphi 0, %s203
      %s205 = sphi 0, %s203
      %s206 = sphi 0, %s205
      %s220 = sphi 0, %s206
      %s224 = sphi 0, %s224
      %s226 = sphi 0, %s224
      %s227 = sphi 0, %s226
      %s241 = sphi 0, %s227
      %s245 = sphi 0, %s245
      %s247 = sphi 0, %s245
      %s248 = sphi 0, %s247
      %s262 = sphi 0, %s248
      %s268 = sphi 0, %s270
      %s271 = sphi 0, %s268
      %s272 = sphi 0, %s271
      %s288 = sphi 0, %s272
    $region4: #{tpu_custom_call.1} parent=1 // loop_header_branch
      %25 = sbr.rel (%p23) target = $region8
    $region5: #{tpu_custom_call.1} parent=1 // loop_body
      %s27 = ssub.s32 %s22, 1
      %s28 = ssub.s32 %s22, 2
      %s29 = sadd.s32 %s22, 1
      %s30 = ssub.s32 %s22, %s29
      %p31 = scmp.eq.s32.totalorder %s30, 0
      %s33 = sadd.s32 %s32, 1
      %s34 = scalar_select %p31, %s32, %s33
      %p37 = pneg %p31
      %p38 = scmp.eq.s32.totalorder %s22, 1
      %p39 = por %p37, %p38
      %p40 = scmp.ne.s32.totalorder %s32, %s35
      %p41 = scmp.eq.s32.totalorder %s22, 0
      %p42 = por %p40, %p41
      %p43 = scmp.ne.s32.totalorder %s32, %s35
      %p44 = scmp.eq.s32.totalorder %s27, 1
      %p45 = por %p43, %p44
      %p46 = scmp.ne.s32.totalorder %s35, %s36
      %p47 = scmp.eq.s32.totalorder %s27, 0
      %p48 = por %p46, %p47
      %p49 = scmp.ne.s32.totalorder %s35, %s36
      %p50 = scmp.eq.s32.totalorder %s28, 1
      %p51 = por %p49, %p50
      %p53 = scmp.ne.s32.totalorder %s36, %s52
      %p54 = scmp.eq.s32.totalorder %s28, 0
      %p55 = por %p53, %p54
      %s57 = sadd.s32 %s56, 1
      %p60 = scmp.eq.s32.totalorder %s22, 1
      %p61 = scmp.ne.s32.totalorder %s56, %s58
      %p62 = scmp.eq.s32.totalorder %s22, 0
      %p63 = por %p61, %p62
      %p64 = scmp.ne.s32.totalorder %s56, %s58
      %p65 = scmp.eq.s32.totalorder %s27, 1
      %p66 = por %p64, %p65
      %p67 = scmp.ne.s32.totalorder %s58, %s59
      %p68 = scmp.eq.s32.totalorder %s27, 0
      %p69 = por %p67, %p68
      %p70 = scmp.ne.s32.totalorder %s58, %s59
      %p71 = scmp.eq.s32.totalorder %s28, 1
      %p72 = por %p70, %p71
      %p74 = scmp.ne.s32.totalorder %s59, %s73
      %p75 = scmp.eq.s32.totalorder %s28, 0
      %p76 = por %p74, %p75
      %s78 = sadd.s32 %s77, 1
      %p81 = scmp.eq.s32.totalorder %s22, 1
      %p82 = scmp.ne.s32.totalorder %s77, %s79
      %p83 = scmp.eq.s32.totalorder %s22, 0
      %p84 = por %p82, %p83
      %p85 = scmp.ne.s32.totalorder %s77, %s79
      %p86 = scmp.eq.s32.totalorder %s27, 1
      %p87 = por %p85, %p86
      %p88 = scmp.ne.s32.totalorder %s79, %s80
      %p89 = scmp.eq.s32.totalorder %s27, 0
      %p90 = por %p88, %p89
      %p91 = scmp.ne.s32.totalorder %s79, %s80
      %p92 = scmp.eq.s32.totalorder %s28, 1
      %p93 = por %p91, %p92
      %p95 = scmp.ne.s32.totalorder %s80, %s94
      %p96 = scmp.eq.s32.totalorder %s28, 0
      %p97 = por %p95, %p96
      %s99 = sadd.s32 %s98, 1
      %p102 = scmp.eq.s32.totalorder %s22, 1
      %p103 = scmp.ne.s32.totalorder %s98, %s100
      %p104 = scmp.eq.s32.totalorder %s22, 0
      %p105 = por %p103, %p104
      %p106 = scmp.ne.s32.totalorder %s98, %s100
      %p107 = scmp.eq.s32.totalorder %s27, 1
      %p108 = por %p106, %p107
      %p109 = scmp.ne.s32.totalorder %s100, %s101
      %p110 = scmp.eq.s32.totalorder %s27, 0
      %p111 = por %p109, %p110
      %p112 = scmp.ne.s32.totalorder %s100, %s101
      %p113 = scmp.eq.s32.totalorder %s28, 1
      %p114 = por %p112, %p113
      %p116 = scmp.ne.s32.totalorder %s101, %s115
      %p117 = scmp.eq.s32.totalorder %s28, 0
      %p118 = por %p116, %p117
      %s120 = sadd.s32 %s119, 1
      %p123 = scmp.eq.s32.totalorder %s22, 1
      %p124 = scmp.ne.s32.totalorder %s119, %s121
      %p125 = scmp.eq.s32.totalorder %s22, 0
      %p126 = por %p124, %p125
      %p127 = scmp.ne.s32.totalorder %s119, %s121
      %p128 = scmp.eq.s32.totalorder %s27, 1
      %p129 = por %p127, %p128
      %p130 = scmp.ne.s32.totalorder %s121, %s122
      %p131 = scmp.eq.s32.totalorder %s27, 0
      %p132 = por %p130, %p131
      %p133 = scmp.ne.s32.totalorder %s121, %s122
      %p134 = scmp.eq.s32.totalorder %s28, 1
      %p135 = por %p133, %p134
      %p137 = scmp.ne.s32.totalorder %s122, %s136
      %p138 = scmp.eq.s32.totalorder %s28, 0
      %p139 = por %p137, %p138
      %s141 = sadd.s32 %s140, 1
      %p144 = scmp.eq.s32.totalorder %s22, 1
      %p145 = scmp.ne.s32.totalorder %s140, %s142
      %p146 = scmp.eq.s32.totalorder %s22, 0
      %p147 = por %p145, %p146
      %p148 = scmp.ne.s32.totalorder %s140, %s142
      %p149 = scmp.eq.s32.totalorder %s27, 1
      %p150 = por %p148, %p149
      %p151 = scmp.ne.s32.totalorder %s142, %s143
      %p152 = scmp.eq.s32.totalorder %s27, 0
      %p153 = por %p151, %p152
      %p154 = scmp.ne.s32.totalorder %s142, %s143
      %p155 = scmp.eq.s32.totalorder %s28, 1
      %p156 = por %p154, %p155
      %p158 = scmp.ne.s32.totalorder %s143, %s157
      %p159 = scmp.eq.s32.totalorder %s28, 0
      %p160 = por %p158, %p159
      %s162 = sadd.s32 %s161, 1
      %p165 = scmp.eq.s32.totalorder %s22, 1
      %p166 = scmp.ne.s32.totalorder %s161, %s163
      %p167 = scmp.eq.s32.totalorder %s22, 0
      %p168 = por %p166, %p167
      %p169 = scmp.ne.s32.totalorder %s161, %s163
      %p170 = scmp.eq.s32.totalorder %s27, 1
      %p171 = por %p169, %p170
      %p172 = scmp.ne.s32.totalorder %s163, %s164
      %p173 = scmp.eq.s32.totalorder %s27, 0
      %p174 = por %p172, %p173
      %p175 = scmp.ne.s32.totalorder %s163, %s164
      %p176 = scmp.eq.s32.totalorder %s28, 1
      %p177 = por %p175, %p176
      %p179 = scmp.ne.s32.totalorder %s164, %s178
      %p180 = scmp.eq.s32.totalorder %s28, 0
      %p181 = por %p179, %p180
      %s183 = sadd.s32 %s182, 1
      %p186 = scmp.eq.s32.totalorder %s22, 1
      %p187 = scmp.ne.s32.totalorder %s182, %s184
      %p188 = scmp.eq.s32.totalorder %s22, 0
      %p189 = por %p187, %p188
      %p190 = scmp.ne.s32.totalorder %s182, %s184
      %p191 = scmp.eq.s32.totalorder %s27, 1
      %p192 = por %p190, %p191
      %p193 = scmp.ne.s32.totalorder %s184, %s185
      %p194 = scmp.eq.s32.totalorder %s27, 0
      %p195 = por %p193, %p194
      %p196 = scmp.ne.s32.totalorder %s184, %s185
      %p197 = scmp.eq.s32.totalorder %s28, 1
      %p198 = por %p196, %p197
      %p200 = scmp.ne.s32.totalorder %s185, %s199
      %p201 = scmp.eq.s32.totalorder %s28, 0
      %p202 = por %p200, %p201
      %s204 = sadd.s32 %s203, 1
      %p207 = scmp.eq.s32.totalorder %s22, 1
      %p208 = scmp.ne.s32.totalorder %s203, %s205
      %p209 = scmp.eq.s32.totalorder %s22, 0
      %p210 = por %p208, %p209
      %p211 = scmp.ne.s32.totalorder %s203, %s205
      %p212 = scmp.eq.s32.totalorder %s27, 1
      %p213 = por %p211, %p212
      %p214 = scmp.ne.s32.totalorder %s205, %s206
      %p215 = scmp.eq.s32.totalorder %s27, 0
      %p216 = por %p214, %p215
      %p217 = scmp.ne.s32.totalorder %s205, %s206
      %p218 = scmp.eq.s32.totalorder %s28, 1
      %p219 = por %p217, %p218
      %p221 = scmp.ne.s32.totalorder %s206, %s220
      %p222 = scmp.eq.s32.totalorder %s28, 0
      %p223 = por %p221, %p222
      %s225 = sadd.s32 %s224, 1
      %p228 = scmp.eq.s32.totalorder %s22, 1
      %p229 = scmp.ne.s32.totalorder %s224, %s226
      %p230 = scmp.eq.s32.totalorder %s22, 0
      %p231 = por %p229, %p230
      %p232 = scmp.ne.s32.totalorder %s224, %s226
      %p233 = scmp.eq.s32.totalorder %s27, 1
      %p234 = por %p232, %p233
      %p235 = scmp.ne.s32.totalorder %s226, %s227
      %p236 = scmp.eq.s32.totalorder %s27, 0
      %p237 = por %p235, %p236
      %p238 = scmp.ne.s32.totalorder %s226, %s227
      %p239 = scmp.eq.s32.totalorder %s28, 1
      %p240 = por %p238, %p239
      %p242 = scmp.ne.s32.totalorder %s227, %s241
      %p243 = scmp.eq.s32.totalorder %s28, 0
      %p244 = por %p242, %p243
      %s246 = sadd.s32 %s245, 1
      %p249 = scmp.eq.s32.totalorder %s22, 1
      %p250 = scmp.ne.s32.totalorder %s245, %s247
      %p251 = scmp.eq.s32.totalorder %s22, 0
      %p252 = por %p250, %p251
      %p253 = scmp.ne.s32.totalorder %s245, %s247
      %p254 = scmp.eq.s32.totalorder %s27, 1
      %p255 = por %p253, %p254
      %p256 = scmp.ne.s32.totalorder %s247, %s248
      %p257 = scmp.eq.s32.totalorder %s27, 0
      %p258 = por %p256, %p257
      %p259 = scmp.ne.s32.totalorder %s247, %s248
      %p260 = scmp.eq.s32.totalorder %s28, 1
      %p261 = por %p259, %p260
      %p263 = scmp.ne.s32.totalorder %s248, %s262
      %p264 = scmp.eq.s32.totalorder %s28, 0
      %p265 = por %p263, %p264
      %s266 = ssub.s32 %s22, %s29
      %p267 = scmp.eq.s32.totalorder %s266, 0
      %s269 = sadd.s32 %s268, 1
      %s270 = scalar_select %p267, %s268, %s269
      %p273 = pneg %p267
      %p274 = scmp.eq.s32.totalorder %s22, 1
      %p275 = por %p273, %p274
      %p276 = scmp.ne.s32.totalorder %s268, %s271
      %p277 = scmp.eq.s32.totalorder %s22, 0
      %p278 = por %p276, %p277
      %p279 = scmp.ne.s32.totalorder %s268, %s271
      %p280 = scmp.eq.s32.totalorder %s27, 1
      %p281 = por %p279, %p280
      %p282 = scmp.ne.s32.totalorder %s271, %s272
      %p283 = scmp.eq.s32.totalorder %s27, 0
      %p284 = por %p282, %p283
      %p285 = scmp.ne.s32.totalorder %s271, %s272
      %p286 = scmp.eq.s32.totalorder %s28, 1
      %p287 = por %p285, %p286
      %p289 = scmp.ne.s32.totalorder %s272, %s288
      %p290 = scmp.eq.s32.totalorder %s28, 0
      %p291 = por %p289, %p290
      %p292 = scmp.le.s32.totalorder 1, %s22
      %p293 = scmp.lt.s32.totalorder %s22, 3
      %p294 = pnand %p292, %p293
      %p295 = pneg %p294
      // Predicated region
      $region9: #{tpu_custom_call.1} parent=5 // pred_check
        _
      $region10: #{tpu_custom_call.1} parent=5 // pred_check_branch
        %297 = sbr.rel (%p294) target = $region12
      $region11: #{tpu_custom_call.1} parent=5 // pred_region
        %s298 = ssub.s32 %s22, 1
        // Predicated region
        $region13: #{tpu_custom_call.1} parent=11 // pred_check
          %p299 = pneg %p69
        $region14: #{tpu_custom_call.1} parent=11 // pred_check_branch
          %301 = sbr.rel (%p299) target = $region16
        $region15: #{tpu_custom_call.1} parent=11 // pred_region
          _
        $region16: #{tpu_custom_call.1} parent=11 // pred_fallthru
          _
        // Predicated region
        $region17: #{tpu_custom_call.1} parent=11 // pred_check
          %p302 = pneg %p90
        $region18: #{tpu_custom_call.1} parent=11 // pred_check_branch
          %304 = sbr.rel (%p302) target = $region20
        $region19: #{tpu_custom_call.1} parent=11 // pred_region
          _
        $region20: #{tpu_custom_call.1} parent=11 // pred_fallthru
          _
        // Predicated region
        $region21: #{tpu_custom_call.1} parent=11 // pred_check
          %p305 = pneg %p111
        $region22: #{tpu_custom_call.1} parent=11 // pred_check_branch
          %307 = sbr.rel (%p305) target = $region24
        $region23: #{tpu_custom_call.1} parent=11 // pred_region
          _
        $region24: #{tpu_custom_call.1} parent=11 // pred_fallthru
          _
        // Predicated region
        $region25: #{tpu_custom_call.1} parent=11 // pred_check
          %p308 = pneg %p132
        $region26: #{tpu_custom_call.1} parent=11 // pred_check_branch
          %310 = sbr.rel (%p308) target = $region28
        $region27: #{tpu_custom_call.1} parent=11 // pred_region
          _
        $region28: #{tpu_custom_call.1} parent=11 // pred_fallthru
          _
        // Predicated region
        $region29: #{tpu_custom_call.1} parent=11 // pred_check
          %p311 = pneg %p153
        $region30: #{tpu_custom_call.1} parent=11 // pred_check_branch
          %313 = sbr.rel (%p311) target = $region32
        $region31: #{tpu_custom_call.1} parent=11 // pred_region
          _
        $region32: #{tpu_custom_call.1} parent=11 // pred_fallthru
          _
        // Predicated region
        $region33: #{tpu_custom_call.1} parent=11 // pred_check
          %p314 = pneg %p174
        $region34: #{tpu_custom_call.1} parent=11 // pred_check_branch
          %316 = sbr.rel (%p314) target = $region36
        $region35: #{tpu_custom_call.1} parent=11 // pred_region
          _
        $region36: #{tpu_custom_call.1} parent=11 // pred_fallthru
          _
        // Predicated region
        $region37: #{tpu_custom_call.1} parent=11 // pred_check
          %p317 = pneg %p195
        $region38: #{tpu_custom_call.1} parent=11 // pred_check_branch
          %319 = sbr.rel (%p317) target = $region40
        $region39: #{tpu_custom_call.1} parent=11 // pred_region
          _
        $region40: #{tpu_custom_call.1} parent=11 // pred_fallthru
          _
        // Predicated region
        $region41: #{tpu_custom_call.1} parent=11 // pred_check
          %p320 = pneg %p216
        $region42: #{tpu_custom_call.1} parent=11 // pred_check_branch
          %322 = sbr.rel (%p320) target = $region44
        $region43: #{tpu_custom_call.1} parent=11 // pred_region
          _
        $region44: #{tpu_custom_call.1} parent=11 // pred_fallthru
          _
        // Predicated region
        $region45: #{tpu_custom_call.1} parent=11 // pred_check
          %p323 = pneg %p237
        $region46: #{tpu_custom_call.1} parent=11 // pred_check_branch
          %325 = sbr.rel (%p323) target = $region48
        $region47: #{tpu_custom_call.1} parent=11 // pred_region
          _
        $region48: #{tpu_custom_call.1} parent=11 // pred_fallthru
          _
        // Predicated region
        $region49: #{tpu_custom_call.1} parent=11 // pred_check
          %p326 = pneg %p258
        $region50: #{tpu_custom_call.1} parent=11 // pred_check_branch
          %328 = sbr.rel (%p326) target = $region52
        $region51: #{tpu_custom_call.1} parent=11 // pred_region
          _
        $region52: #{tpu_custom_call.1} parent=11 // pred_fallthru
          _
      $region12: #{tpu_custom_call.1} parent=5 // pred_fallthru
        _
      %p329 = scmp.lt.s32.totalorder %s22, 2
      // Predicated region
      $region53: #{tpu_custom_call.1} parent=5 // pred_check
        %p330 = pneg %p329
      $region54: #{tpu_custom_call.1} parent=5 // pred_check_branch
        %332 = sbr.rel (%p330) target = $region56
      $region55: #{tpu_custom_call.1} parent=5 // pred_region
        // Predicated region
        $region57: #{tpu_custom_call.1} parent=55 // pred_check
          %p333 = pneg %p42
        $region58: #{tpu_custom_call.1} parent=55 // pred_check_branch
          %335 = sbr.rel (%p333) target = $region60
        $region59: #{tpu_custom_call.1} parent=55 // pred_region
          %p336 = scmp.lt.s32.totalorder %s22, 1
          %s337 = scalar_select %p336, %s22, 1
          %s338 = smul.addr %s337, 8
          %s339 = scalar_lea.vmem %s0, %s338
        $region60: #{tpu_custom_call.1} parent=55 // pred_fallthru
          _
      $region56: #{tpu_custom_call.1} parent=5 // pred_fallthru
        _
      %p340 = scmp.le.s32.totalorder 1, %s22
      %p341 = scmp.lt.s32.totalorder %s22, 3
      %p342 = pnand %p340, %p341
      %p343 = pneg %p342
      // Predicated region
      $region61: #{tpu_custom_call.1} parent=5 // pred_check
        _
      $region62: #{tpu_custom_call.1} parent=5 // pred_check_branch
        %345 = sbr.rel (%p342) target = $region64
      $region63: #{tpu_custom_call.1} parent=5 // pred_region
        %s346 = ssub.s32 %s22, 1
        %p347 = scmp.lt.s32.totalorder %s27, 1
        %s348 = scalar_select %p347, %s27, 1
        %s349 = smul.addr %s348, 8
        %s350 = scalar_lea.vmem %s0, %s349
        %p351 = pneg %p48
        %p352 = pneg %p45
        %p353 = pneg %p69
        %p354 = pneg %p66
        %p355 = pneg %p90
        %p356 = pneg %p87
        %p357 = pneg %p111
        %p358 = pneg %p108
        %p359 = pneg %p132
        %p360 = pneg %p129
        %p361 = pneg %p153
        %p362 = pneg %p150
        %p363 = pneg %p174
        %p364 = pneg %p171
        %p365 = pneg %p195
        %p366 = pneg %p192
        %p367 = pneg %p216
        %p368 = pneg %p213
        %p369 = pneg %p237
        %p370 = pneg %p234
        %p371 = pneg %p258
        %p372 = pneg %p255
        %p373 = pneg %p284
        %p374 = pneg %p281
        %s375 = sand.u32 %s271, 1
        %s376 = scalar_lea.sflag [#allocation4], %s375
        %s377 = sand.u32 %s271, 1
        %s378 = scalar_lea.vmem [#allocation3], %s377
        %p379 = scmp.lt.s32.totalorder %s27, 1
        %s380 = scalar_select %p379, %s27, 1
        %s381 = smul.addr %s380, 8
        %s382 = scalar_lea.vmem %s0, %s381
        %v383 = vld [vmem:[%s382] sm:$0x1f]
        %v384 = vld [vmem:[%s1] sm:$0xff]
        %v385 = vld [vmem:[%s1 + $0x8] sm:$0xff]
        %v386 = vld [vmem:[%s1 + $0x10] sm:$0xff]
        %v387 = vld [vmem:[%s1 + $0x18] sm:$0xff]
        %v388 = vld [vmem:[%s1 + $0x20] sm:$0xff]
        %v389 = vld [vmem:[%s1 + $0x28] sm:$0xff]
        %v390 = vld [vmem:[%s1 + $0x30] sm:$0xff]
        %v391 = vld [vmem:[%s1 + $0x38] sm:$0xff]
        %v392 = vld [vmem:[%s1 + $0x40] sm:$0xff]
        %v393 = vld [vmem:[%s1 + $0x48] sm:$0xff]
        %v394 = vld [vmem:[%s1 + $0x50] sm:$0xff]
        %v395 = vld [vmem:[%s1 + $0x58] sm:$0xff]
        %v396 = vld [vmem:[%s1 + $0x60] sm:$0xff]
        %v397 = vld [vmem:[%s1 + $0x68] sm:$0xff]
        %v398 = vld [vmem:[%s1 + $0x70] sm:$0xff]
        %v399 = vld [vmem:[%s1 + $0x78] sm:$0xff]
        %v400 = vld [vmem:[%s2] sm:$0xff]
        %v401 = vld [vmem:[%s2 + $0x8] sm:$0xff]
        %v402 = vld [vmem:[%s2 + $0x10] sm:$0xff]
        %v403 = vld [vmem:[%s2 + $0x18] sm:$0xff]
        %v404 = vld [vmem:[%s2 + $0x20] sm:$0xff]
        %v405 = vld [vmem:[%s2 + $0x28] sm:$0xff]
        %v406 = vld [vmem:[%s2 + $0x30] sm:$0xff]
        %v407 = vld [vmem:[%s2 + $0x38] sm:$0xff]
        %v408 = vld [vmem:[%s2 + $0x40] sm:$0xff]
        %v409 = vld [vmem:[%s2 + $0x48] sm:$0xff]
        %v410 = vld [vmem:[%s2 + $0x50] sm:$0xff]
        %v411 = vld [vmem:[%s2 + $0x58] sm:$0xff]
        %v412 = vld [vmem:[%s2 + $0x60] sm:$0xff]
        %v413 = vld [vmem:[%s2 + $0x68] sm:$0xff]
        %v414 = vld [vmem:[%s2 + $0x70] sm:$0xff]
        %v415 = vld [vmem:[%s2 + $0x78] sm:$0xff]
        %417 = vset.pattern.permute.xlu0 0
        %418 = vperm.xlu0 %417, %v400
        %v419 = vpop.permute.xlu0 %418
        %422 = vset.pattern.permute.xlu0 0
        %423 = vperm.xlu0 %422, %v401
        %v424 = vpop.permute.xlu0 %423
        %427 = vset.pattern.permute.xlu0 0
        %428 = vperm.xlu0 %427, %v402
        %v429 = vpop.permute.xlu0 %428
        %432 = vset.pattern.permute.xlu0 0
        %433 = vperm.xlu0 %432, %v403
        %v434 = vpop.permute.xlu0 %433
        %437 = vset.pattern.permute.xlu0 0
        %438 = vperm.xlu0 %437, %v404
        %v439 = vpop.permute.xlu0 %438
        %442 = vset.pattern.permute.xlu0 0
        %443 = vperm.xlu0 %442, %v405
        %v444 = vpop.permute.xlu0 %443
        %447 = vset.pattern.permute.xlu0 0
        %448 = vperm.xlu0 %447, %v406
        %v449 = vpop.permute.xlu0 %448
        %452 = vset.pattern.permute.xlu0 0
        %453 = vperm.xlu0 %452, %v407
        %v454 = vpop.permute.xlu0 %453
        %457 = vset.pattern.permute.xlu0 0
        %458 = vperm.xlu0 %457, %v408
        %v459 = vpop.permute.xlu0 %458
        %462 = vset.pattern.permute.xlu0 0
        %463 = vperm.xlu0 %462, %v409
        %v464 = vpop.permute.xlu0 %463
        %467 = vset.pattern.permute.xlu0 0
        %468 = vperm.xlu0 %467, %v410
        %v469 = vpop.permute.xlu0 %468
        %472 = vset.pattern.permute.xlu0 0
        %473 = vperm.xlu0 %472, %v411
        %v474 = vpop.permute.xlu0 %473
        %477 = vset.pattern.permute.xlu0 0
        %478 = vperm.xlu0 %477, %v412
        %v479 = vpop.permute.xlu0 %478
        %482 = vset.pattern.permute.xlu0 0
        %483 = vperm.xlu0 %482, %v413
        %v484 = vpop.permute.xlu0 %483
        %487 = vset.pattern.permute.xlu0 0
        %488 = vperm.xlu0 %487, %v414
        %v489 = vpop.permute.xlu0 %488
        %492 = vset.pattern.permute.xlu0 0
        %493 = vperm.xlu0 %492, %v415
        %v494 = vpop.permute.xlu0 %493
        %vm496 = vcmask 39936
        %v498 = vsel %vm496, %v384, 0
        %v501 = vsel %vm496, %v385, 0
        %v504 = vsel %vm496, %v386, 0
        %v507 = vsel %vm496, %v387, 0
        %v510 = vsel %vm496, %v388, 0
        %v513 = vsel %vm496, %v389, 0
        %v516 = vsel %vm496, %v390, 0
        %v519 = vsel %vm496, %v391, 0
        %v522 = vsel %vm496, %v392, 0
        %v525 = vsel %vm496, %v393, 0
        %v528 = vsel %vm496, %v394, 0
        %v531 = vsel %vm496, %v395, 0
        %v534 = vsel %vm496, %v396, 0
        %v537 = vsel %vm496, %v397, 0
        %v540 = vsel %vm496, %v398, 0
        %v543 = vsel %vm496, %v399, 0
        %vm545 = vcmask 1044480
        %v547 = vsel %vm545, %v383, 0
        %549 = vmatprep.subr.mxu0 0.0
        %550 = vmatpush1.msra.mxu0 %v547
        %551 = vmatprep.subr.mxu0 0.0
        %552 = vmatpush1.msra.mxu0 0.0
        %553 = vmatprep.subr.mxu0 0.0
        %554 = vmatpush1.msra.mxu0 0.0
        %555 = vmatprep.subr.mxu0 0.0
        %556 = vmatpush1.msra.mxu0 0.0
        %557 = vmatprep.subr.mxu0 0.0
        %558 = vmatpush1.msra.mxu0 0.0
        %559 = vmatprep.subr.mxu0 0.0
        %560 = vmatpush1.msra.mxu0 0.0
        %561 = vmatprep.subr.mxu0 0.0
        %562 = vmatpush1.msra.mxu0 0.0
        %563 = vmatprep.subr.mxu0 0.0
        %564 = vmatpush1.msra.mxu0 0.0
        %565 = vmatprep.subr.mxu0 0.0
        %566 = vmatpush1.msra.mxu0 0.0
        %567 = vmatprep.subr.mxu0 0.0
        %568 = vmatpush1.msra.mxu0 0.0
        %569 = vmatprep.subr.mxu0 0.0
        %570 = vmatpush1.msra.mxu0 0.0
        %571 = vmatprep.subr.mxu0 0.0
        %572 = vmatpush1.msra.mxu0 0.0
        %573 = vmatprep.subr.mxu0 0.0
        %574 = vmatpush1.msra.mxu0 0.0
        %575 = vmatprep.subr.mxu0 0.0
        %576 = vmatpush1.msra.mxu0 0.0
        %577 = vmatprep.subr.mxu0 0.0
        %578 = vmatpush1.msra.mxu0 0.0
        %579 = vmatprep.subr.mxu0 0.0
        %580 = vmatpush1.msra.mxu0 0.0
        %581 = vmatprep.subr.mxu0 0.0
        %582 = vmatpush1.msra.mxu0 0.0
        %583 = vmatprep.subr.mxu0 0.0
        %584 = vmatpush1.msra.mxu0 0.0
        %585 = vmatprep.subr.mxu0 0.0
        %586 = vmatpush1.msra.mxu0 0.0
        %587 = vmatprep.subr.mxu0 0.0
        %588 = vmatpush1.msra.mxu0 0.0
        %589 = vmatprep.subr.mxu0 0.0
        %590 = vmatpush1.msra.mxu0 0.0
        %591 = vmatprep.subr.mxu0 0.0
        %592 = vmatpush1.msra.mxu0 0.0
        %593 = vmatprep.subr.mxu0 0.0
        %594 = vmatpush1.msra.mxu0 0.0
        %595 = vmatprep.subr.mxu0 0.0
        %596 = vmatpush1.msra.mxu0 0.0
        %597 = vmatprep.subr.mxu0 0.0
        %598 = vmatpush1.msra.mxu0 0.0
        %599 = vmatprep.subr.mxu0 0.0
        %600 = vmatpush1.msra.mxu0 0.0
        %601 = vmatprep.subr.mxu0 0.0
        %602 = vmatpush1.msra.mxu0 0.0
        %603 = vmatprep.subr.mxu0 0.0
        %604 = vmatpush1.msra.mxu0 0.0
        %605 = vmatprep.subr.mxu0 0.0
        %606 = vmatpush1.msra.mxu0 0.0
        %607 = vmatprep.subr.mxu0 0.0
        %608 = vmatpush1.msra.mxu0 0.0
        %609 = vmatprep.subr.mxu0 0.0
        %610 = vmatpush1.msra.mxu0 0.0
        %611 = vmatprep.subr.mxu0 0.0
        %612 = vmatpush1.msra.mxu0 0.0
        %613 = vmatprep.mubr.f32.mxu0 0.0
        %614 = vmatmul.mubr.f32.gmra.mrb[0].mxu0 %v498
        %v615 = vpop.f32.mrb[0].mxu0
        %v616 = vadd.f32 %v419, %v615
        %v617 = vpop.f32.mrb[0].mxu0
        %618 = vmatprep.mubr.f32.mxu0 0.0
        %619 = vmatmul.mubr.f32.gmra.mrb[0].mxu0 %v501
        %v620 = vpop.f32.mrb[0].mxu0
        %v621 = vadd.f32 %v424, %v620
        %v622 = vpop.f32.mrb[0].mxu0
        %623 = vmatprep.mubr.f32.mxu0 0.0
        %624 = vmatmul.mubr.f32.gmra.mrb[0].mxu0 %v504
        %v625 = vpop.f32.mrb[0].mxu0
        %v626 = vadd.f32 %v429, %v625
        %v627 = vpop.f32.mrb[0].mxu0
        %628 = vmatprep.mubr.f32.mxu0 0.0
        %629 = vmatmul.mubr.f32.gmra.mrb[0].mxu0 %v507
        %v630 = vpop.f32.mrb[0].mxu0
        %v631 = vadd.f32 %v434, %v630
        %v632 = vpop.f32.mrb[0].mxu0
        %633 = vmatprep.mubr.f32.mxu0 0.0
        %634 = vmatmul.mubr.f32.gmra.mrb[0].mxu0 %v510
        %v635 = vpop.f32.mrb[0].mxu0
        %v636 = vadd.f32 %v439, %v635
        %v637 = vpop.f32.mrb[0].mxu0
        %638 = vmatprep.mubr.f32.mxu0 0.0
        %639 = vmatmul.mubr.f32.gmra.mrb[0].mxu0 %v513
        %v640 = vpop.f32.mrb[0].mxu0
        %v641 = vadd.f32 %v444, %v640
        %v642 = vpop.f32.mrb[0].mxu0
        %643 = vmatprep.mubr.f32.mxu0 0.0
        %644 = vmatmul.mubr.f32.gmra.mrb[0].mxu0 %v516
        %v645 = vpop.f32.mrb[0].mxu0
        %v646 = vadd.f32 %v449, %v645
        %v647 = vpop.f32.mrb[0].mxu0
        %648 = vmatprep.mubr.f32.mxu0 0.0
        %649 = vmatmul.mubr.f32.gmra.mrb[0].mxu0 %v519
        %v650 = vpop.f32.mrb[0].mxu0
        %v651 = vadd.f32 %v454, %v650
        %v652 = vpop.f32.mrb[0].mxu0
        %653 = vmatprep.mubr.f32.mxu0 0.0
        %654 = vmatmul.mubr.f32.gmra.mrb[0].mxu0 %v522
        %v655 = vpop.f32.mrb[0].mxu0
        %v656 = vadd.f32 %v459, %v655
        %v657 = vpop.f32.mrb[0].mxu0
        %658 = vmatprep.mubr.f32.mxu0 0.0
        %659 = vmatmul.mubr.f32.gmra.mrb[0].mxu0 %v525
        %v660 = vpop.f32.mrb[0].mxu0
        %v661 = vadd.f32 %v464, %v660
        %v662 = vpop.f32.mrb[0].mxu0
        %663 = vmatprep.mubr.f32.mxu0 0.0
        %664 = vmatmul.mubr.f32.gmra.mrb[0].mxu0 %v528
        %v665 = vpop.f32.mrb[0].mxu0
        %v666 = vadd.f32 %v469, %v665
        %v667 = vpop.f32.mrb[0].mxu0
        %668 = vmatprep.mubr.f32.mxu0 0.0
        %669 = vmatmul.mubr.f32.gmra.mrb[0].mxu0 %v531
        %v670 = vpop.f32.mrb[0].mxu0
        %v671 = vadd.f32 %v474, %v670
        %v672 = vpop.f32.mrb[0].mxu0
        %673 = vmatprep.mubr.f32.mxu0 0.0
        %674 = vmatmul.mubr.f32.gmra.mrb[0].mxu0 %v534
        %v675 = vpop.f32.mrb[0].mxu0
        %v676 = vadd.f32 %v479, %v675
        %v677 = vpop.f32.mrb[0].mxu0
        %678 = vmatprep.mubr.f32.mxu0 0.0
        %679 = vmatmul.mubr.f32.gmra.mrb[0].mxu0 %v537
        %v680 = vpop.f32.mrb[0].mxu0
        %v681 = vadd.f32 %v484, %v680
        %v682 = vpop.f32.mrb[0].mxu0
        %683 = vmatprep.mubr.f32.mxu0 0.0
        %684 = vmatmul.mubr.f32.gmra.mrb[0].mxu0 %v540
        %v685 = vpop.f32.mrb[0].mxu0
        %v686 = vadd.f32 %v489, %v685
        %v687 = vpop.f32.mrb[0].mxu0
        %688 = vmatprep.mubr.f32.mxu0 0.0
        %689 = vmatmul.mubr.f32.gmra.mrb[0].mxu0 %v543
        %v690 = vpop.f32.mrb[0].mxu0
        %v691 = vadd.f32 %v494, %v690
        %v692 = vpop.f32.mrb[0].mxu0
        %693 = vdwg.mxu0
        %v694 = vmax.f32 %v616, 0.0
        %v695 = vmax.f32 %v621, 0.0
        %v696 = vmax.f32 %v626, 0.0
        %v697 = vmax.f32 %v631, 0.0
        %v698 = vmax.f32 %v636, 0.0
        %v699 = vmax.f32 %v641, 0.0
        %v700 = vmax.f32 %v646, 0.0
        %v701 = vmax.f32 %v651, 0.0
        %v702 = vmax.f32 %v656, 0.0
        %v703 = vmax.f32 %v661, 0.0
        %v704 = vmax.f32 %v666, 0.0
        %v705 = vmax.f32 %v671, 0.0
        %v706 = vmax.f32 %v676, 0.0
        %v707 = vmax.f32 %v681, 0.0
        %v708 = vmax.f32 %v686, 0.0
        %v709 = vmax.f32 %v691, 0.0
        %v710 = vld [vmem:[%s3] sm:$0xff]
        %v711 = vld [vmem:[%s3 + $0x8] sm:$0xff]
        %v712 = vld [vmem:[%s3 + $0x10] sm:$0xff]
        %v713 = vld [vmem:[%s3 + $0x18] sm:$0xff]
        %v714 = vld [vmem:[%s3 + $0x20] sm:$0xff]
        %v715 = vld [vmem:[%s3 + $0x28] sm:$0xff]
        %v716 = vld [vmem:[%s3 + $0x30] sm:$0xff]
        %v717 = vld [vmem:[%s3 + $0x38] sm:$0xff]
        %v718 = vld [vmem:[%s3 + $0x40] sm:$0xff]
        %v719 = vld [vmem:[%s3 + $0x48] sm:$0xff]
        %v720 = vld [vmem:[%s3 + $0x50] sm:$0xff]
        %v721 = vld [vmem:[%s3 + $0x58] sm:$0xff]
        %v722 = vld [vmem:[%s3 + $0x60] sm:$0xff]
        %v723 = vld [vmem:[%s3 + $0x68] sm:$0xff]
        %v724 = vld [vmem:[%s3 + $0x70] sm:$0xff]
        %v725 = vld [vmem:[%s3 + $0x78] sm:$0xff]
        %v726 = vld [vmem:[%s4] sm:$0xff]
        %v727 = vld [vmem:[%s4 + $0x8] sm:$0xff]
        %v728 = vld [vmem:[%s4 + $0x10] sm:$0xff]
        %v729 = vld [vmem:[%s4 + $0x18] sm:$0xff]
        %v730 = vld [vmem:[%s4 + $0x20] sm:$0xff]
        %v731 = vld [vmem:[%s4 + $0x28] sm:$0xff]
        %v732 = vld [vmem:[%s4 + $0x30] sm:$0xff]
        %v733 = vld [vmem:[%s4 + $0x38] sm:$0xff]
        %v734 = vld [vmem:[%s4 + $0x40] sm:$0xff]
        %v735 = vld [vmem:[%s4 + $0x48] sm:$0xff]
        %v736 = vld [vmem:[%s4 + $0x50] sm:$0xff]
        %v737 = vld [vmem:[%s4 + $0x58] sm:$0xff]
        %v738 = vld [vmem:[%s4 + $0x60] sm:$0xff]
        %v739 = vld [vmem:[%s4 + $0x68] sm:$0xff]
        %v740 = vld [vmem:[%s4 + $0x70] sm:$0xff]
        %v741 = vld [vmem:[%s4 + $0x78] sm:$0xff]
        %743 = vset.pattern.permute.xlu0 0
        %744 = vperm.xlu0 %743, %v726
        %v745 = vpop.permute.xlu0 %744
        %748 = vset.pattern.permute.xlu0 0
        %749 = vperm.xlu0 %748, %v727
        %v750 = vpop.permute.xlu0 %749
        %753 = vset.pattern.permute.xlu0 0
        %754 = vperm.xlu0 %753, %v728
        %v755 = vpop.permute.xlu0 %754
        %758 = vset.pattern.permute.xlu0 0
        %759 = vperm.xlu0 %758, %v729
        %v760 = vpop.permute.xlu0 %759
        %763 = vset.pattern.permute.xlu0 0
        %764 = vperm.xlu0 %763, %v730
        %v765 = vpop.permute.xlu0 %764
        %768 = vset.pattern.permute.xlu0 0
        %769 = vperm.xlu0 %768, %v731
        %v770 = vpop.permute.xlu0 %769
        %773 = vset.pattern.permute.xlu0 0
        %774 = vperm.xlu0 %773, %v732
        %v775 = vpop.permute.xlu0 %774
        %778 = vset.pattern.permute.xlu0 0
        %779 = vperm.xlu0 %778, %v733
        %v780 = vpop.permute.xlu0 %779
        %783 = vset.pattern.permute.xlu0 0
        %784 = vperm.xlu0 %783, %v734
        %v785 = vpop.permute.xlu0 %784
        %788 = vset.pattern.permute.xlu0 0
        %789 = vperm.xlu0 %788, %v735
        %v790 = vpop.permute.xlu0 %789
        %793 = vset.pattern.permute.xlu0 0
        %794 = vperm.xlu0 %793, %v736
        %v795 = vpop.permute.xlu0 %794
        %798 = vset.pattern.permute.xlu0 0
        %799 = vperm.xlu0 %798, %v737
        %v800 = vpop.permute.xlu0 %799
        %803 = vset.pattern.permute.xlu0 0
        %804 = vperm.xlu0 %803, %v738
        %v805 = vpop.permute.xlu0 %804
        %808 = vset.pattern.permute.xlu0 0
        %809 = vperm.xlu0 %808, %v739
        %v810 = vpop.permute.xlu0 %809
        %813 = vset.pattern.permute.xlu0 0
        %814 = vperm.xlu0 %813, %v740
        %v815 = vpop.permute.xlu0 %814
        %818 = vset.pattern.permute.xlu0 0
        %819 = vperm.xlu0 %818, %v741
        %v820 = vpop.permute.xlu0 %819
        %822 = vmatprep.subr.mxu0 0.0
        %823 = vmatpush1.msra.mxu0 %v694
        %824 = vmatprep.subr.mxu0 0.0
        %825 = vmatpush1.msra.mxu0 %v695
        %826 = vmatprep.subr.mxu0 0.0
        %827 = vmatpush1.msra.mxu0 %v696
        %828 = vmatprep.subr.mxu0 0.0
        %829 = vmatpush1.msra.mxu0 %v697
        %830 = vmatprep.subr.mxu0 0.0
        %831 = vmatpush1.msra.mxu0 %v698
        %832 = vmatprep.subr.mxu0 0.0
        %833 = vmatpush1.msra.mxu0 %v699
        %834 = vmatprep.subr.mxu0 0.0
        %835 = vmatpush1.msra.mxu0 %v700
        %836 = vmatprep.subr.mxu0 0.0
        %837 = vmatpush1.msra.mxu0 %v701
        %838 = vmatprep.subr.mxu0 0.0
        %839 = vmatpush1.msra.mxu0 %v702
        %840 = vmatprep.subr.mxu0 0.0
        %841 = vmatpush1.msra.mxu0 %v703
        %842 = vmatprep.subr.mxu0 0.0
        %843 = vmatpush1.msra.mxu0 %v704
        %844 = vmatprep.subr.mxu0 0.0
        %845 = vmatpush1.msra.mxu0 %v705
        %846 = vmatprep.subr.mxu0 0.0
        %847 = vmatpush1.msra.mxu0 %v706
        %848 = vmatprep.subr.mxu0 0.0
        %849 = vmatpush1.msra.mxu0 %v707
        %850 = vmatprep.subr.mxu0 0.0
        %851 = vmatpush1.msra.mxu0 %v708
        %852 = vmatprep.subr.mxu0 0.0
        %853 = vmatpush1.msra.mxu0 %v709
        %854 = vmatprep.subr.mxu0 0.0
        %855 = vmatpush1.msra.mxu0 0.0
        %856 = vmatprep.subr.mxu0 0.0
        %857 = vmatpush1.msra.mxu0 0.0
        %858 = vmatprep.subr.mxu0 0.0
        %859 = vmatpush1.msra.mxu0 0.0
        %860 = vmatprep.subr.mxu0 0.0
        %861 = vmatpush1.msra.mxu0 0.0
        %862 = vmatprep.subr.mxu0 0.0
        %863 = vmatpush1.msra.mxu0 0.0
        %864 = vmatprep.subr.mxu0 0.0
        %865 = vmatpush1.msra.mxu0 0.0
        %866 = vmatprep.subr.mxu0 0.0
        %867 = vmatpush1.msra.mxu0 0.0
        %868 = vmatprep.subr.mxu0 0.0
        %869 = vmatpush1.msra.mxu0 0.0
        %870 = vmatprep.subr.mxu0 0.0
        %871 = vmatpush1.msra.mxu0 0.0
        %872 = vmatprep.subr.mxu0 0.0
        %873 = vmatpush1.msra.mxu0 0.0
        %874 = vmatprep.subr.mxu0 0.0
        %875 = vmatpush1.msra.mxu0 0.0
        %876 = vmatprep.subr.mxu0 0.0
        %877 = vmatpush1.msra.mxu0 0.0
        %878 = vmatprep.subr.mxu0 0.0
        %879 = vmatpush1.msra.mxu0 0.0
        %880 = vmatprep.subr.mxu0 0.0
        %881 = vmatpush1.msra.mxu0 0.0
        %882 = vmatprep.subr.mxu0 0.0
        %883 = vmatpush1.msra.mxu0 0.0
        %884 = vmatprep.subr.mxu0 0.0
        %885 = vmatpush1.msra.mxu0 0.0
        %886 = vmatprep.mubr.f32.mxu0 0.0
        %887 = vmatmul.mubr.f32.gmra.mrb[0].mxu0 %v710
        %v888 = vpop.f32.mrb[0].mxu0
        %v889 = vadd.f32 %v745, %v888
        %v890 = vpop.f32.mrb[0].mxu0
        %891 = vmatprep.mubr.f32.mxu0 0.0
        %892 = vmatmul.mubr.f32.gmra.mrb[0].mxu0 %v711
        %v893 = vpop.f32.mrb[0].mxu0
        %v894 = vadd.f32 %v750, %v893
        %v895 = vpop.f32.mrb[0].mxu0
        %896 = vmatprep.mubr.f32.mxu0 0.0
        %897 = vmatmul.mubr.f32.gmra.mrb[0].mxu0 %v712
        %v898 = vpop.f32.mrb[0].mxu0
        %v899 = vadd.f32 %v755, %v898
        %v900 = vpop.f32.mrb[0].mxu0
        %901 = vmatprep.mubr.f32.mxu0 0.0
        %902 = vmatmul.mubr.f32.gmra.mrb[0].mxu0 %v713
        %v903 = vpop.f32.mrb[0].mxu0
        %v904 = vadd.f32 %v760, %v903
        %v905 = vpop.f32.mrb[0].mxu0
        %906 = vmatprep.mubr.f32.mxu0 0.0
        %907 = vmatmul.mubr.f32.gmra.mrb[0].mxu0 %v714
        %v908 = vpop.f32.mrb[0].mxu0
        %v909 = vadd.f32 %v765, %v908
        %v910 = vpop.f32.mrb[0].mxu0
        %911 = vmatprep.mubr.f32.mxu0 0.0
        %912 = vmatmul.mubr.f32.gmra.mrb[0].mxu0 %v715
        %v913 = vpop.f32.mrb[0].mxu0
        %v914 = vadd.f32 %v770, %v913
        %v915 = vpop.f32.mrb[0].mxu0
        %916 = vmatprep.mubr.f32.mxu0 0.0
        %917 = vmatmul.mubr.f32.gmra.mrb[0].mxu0 %v716
        %v918 = vpop.f32.mrb[0].mxu0
        %v919 = vadd.f32 %v775, %v918
        %v920 = vpop.f32.mrb[0].mxu0
        %921 = vmatprep.mubr.f32.mxu0 0.0
        %922 = vmatmul.mubr.f32.gmra.mrb[0].mxu0 %v717
        %v923 = vpop.f32.mrb[0].mxu0
        %v924 = vadd.f32 %v780, %v923
        %v925 = vpop.f32.mrb[0].mxu0
        %926 = vmatprep.mubr.f32.mxu0 0.0
        %927 = vmatmul.mubr.f32.gmra.mrb[0].mxu0 %v718
        %v928 = vpop.f32.mrb[0].mxu0
        %v929 = vadd.f32 %v785, %v928
        %v930 = vpop.f32.mrb[0].mxu0
        %931 = vmatprep.mubr.f32.mxu0 0.0
        %932 = vmatmul.mubr.f32.gmra.mrb[0].mxu0 %v719
        %v933 = vpop.f32.mrb[0].mxu0
        %v934 = vadd.f32 %v790, %v933
        %v935 = vpop.f32.mrb[0].mxu0
        %936 = vmatprep.mubr.f32.mxu0 0.0
        %937 = vmatmul.mubr.f32.gmra.mrb[0].mxu0 %v720
        %v938 = vpop.f32.mrb[0].mxu0
        %v939 = vadd.f32 %v795, %v938
        %v940 = vpop.f32.mrb[0].mxu0
        %941 = vmatprep.mubr.f32.mxu0 0.0
        %942 = vmatmul.mubr.f32.gmra.mrb[0].mxu0 %v721
        %v943 = vpop.f32.mrb[0].mxu0
        %v944 = vadd.f32 %v800, %v943
        %v945 = vpop.f32.mrb[0].mxu0
        %946 = vmatprep.mubr.f32.mxu0 0.0
        %947 = vmatmul.mubr.f32.gmra.mrb[0].mxu0 %v722
        %v948 = vpop.f32.mrb[0].mxu0
        %v949 = vadd.f32 %v805, %v948
        %v950 = vpop.f32.mrb[0].mxu0
        %951 = vmatprep.mubr.f32.mxu0 0.0
        %952 = vmatmul.mubr.f32.gmra.mrb[0].mxu0 %v723
        %v953 = vpop.f32.mrb[0].mxu0
        %v954 = vadd.f32 %v810, %v953
        %v955 = vpop.f32.mrb[0].mxu0
        %956 = vmatprep.mubr.f32.mxu0 0.0
        %957 = vmatmul.mubr.f32.gmra.mrb[0].mxu0 %v724
        %v958 = vpop.f32.mrb[0].mxu0
        %v959 = vadd.f32 %v815, %v958
        %v960 = vpop.f32.mrb[0].mxu0
        %961 = vmatprep.mubr.f32.mxu0 0.0
        %962 = vmatmul.mubr.f32.gmra.mrb[0].mxu0 %v725
        %v963 = vpop.f32.mrb[0].mxu0
        %v964 = vadd.f32 %v820, %v963
        %v965 = vpop.f32.mrb[0].mxu0
        %966 = vdwg.mxu0
        %v967 = vmax.f32 %v889, 0.0
        %v968 = vmax.f32 %v894, 0.0
        %v969 = vmax.f32 %v899, 0.0
        %v970 = vmax.f32 %v904, 0.0
        %v971 = vmax.f32 %v909, 0.0
        %v972 = vmax.f32 %v914, 0.0
        %v973 = vmax.f32 %v919, 0.0
        %v974 = vmax.f32 %v924, 0.0
        %v975 = vmax.f32 %v929, 0.0
        %v976 = vmax.f32 %v934, 0.0
        %v977 = vmax.f32 %v939, 0.0
        %v978 = vmax.f32 %v944, 0.0
        %v979 = vmax.f32 %v949, 0.0
        %v980 = vmax.f32 %v954, 0.0
        %v981 = vmax.f32 %v959, 0.0
        %v982 = vmax.f32 %v964, 0.0
        %v983 = vld [vmem:[%s5] sm:$0xff]
        %v984 = vld [vmem:[%s5 + $0x8] sm:$0xff]
        %v985 = vld [vmem:[%s5 + $0x10] sm:$0xff]
        %v986 = vld [vmem:[%s5 + $0x18] sm:$0xff]
        %v987 = vld [vmem:[%s5 + $0x20] sm:$0xff]
        %v988 = vld [vmem:[%s5 + $0x28] sm:$0xff]
        %v989 = vld [vmem:[%s5 + $0x30] sm:$0xff]
        %v990 = vld [vmem:[%s5 + $0x38] sm:$0xff]
        %v991 = vld [vmem:[%s6] sm:$0xff]
        %v992 = vld [vmem:[%s6 + $0x8] sm:$0xff]
        %v993 = vld [vmem:[%s6 + $0x10] sm:$0xff]
        %v994 = vld [vmem:[%s6 + $0x18] sm:$0xff]
        %v995 = vld [vmem:[%s6 + $0x20] sm:$0xff]
        %v996 = vld [vmem:[%s6 + $0x28] sm:$0xff]
        %v997 = vld [vmem:[%s6 + $0x30] sm:$0xff]
        %v998 = vld [vmem:[%s6 + $0x38] sm:$0xff]
        %1000 = vset.pattern.permute.xlu0 0
        %1001 = vperm.xlu0 %1000, %v991
        %v1002 = vpop.permute.xlu0 %1001
        %1005 = vset.pattern.permute.xlu0 0
        %1006 = vperm.xlu0 %1005, %v992
        %v1007 = vpop.permute.xlu0 %1006
        %1010 = vset.pattern.permute.xlu0 0
        %1011 = vperm.xlu0 %1010, %v993
        %v1012 = vpop.permute.xlu0 %1011
        %1015 = vset.pattern.permute.xlu0 0
        %1016 = vperm.xlu0 %1015, %v994
        %v1017 = vpop.permute.xlu0 %1016
        %1020 = vset.pattern.permute.xlu0 0
        %1021 = vperm.xlu0 %1020, %v995
        %v1022 = vpop.permute.xlu0 %1021
        %1025 = vset.pattern.permute.xlu0 0
        %1026 = vperm.xlu0 %1025, %v996
        %v1027 = vpop.permute.xlu0 %1026
        %1030 = vset.pattern.permute.xlu0 0
        %1031 = vperm.xlu0 %1030, %v997
        %v1032 = vpop.permute.xlu0 %1031
        %1035 = vset.pattern.permute.xlu0 0
        %1036 = vperm.xlu0 %1035, %v998
        %v1037 = vpop.permute.xlu0 %1036
        %1039 = vmatprep.subr.mxu0 0.0
        %1040 = vmatpush1.msra.mxu0 %v967
        %1041 = vmatprep.subr.mxu0 0.0
        %1042 = vmatpush1.msra.mxu0 %v968
        %1043 = vmatprep.subr.mxu0 0.0
        %1044 = vmatpush1.msra.mxu0 %v969
        %1045 = vmatprep.subr.mxu0 0.0
        %1046 = vmatpush1.msra.mxu0 %v970
        %1047 = vmatprep.subr.mxu0 0.0
        %1048 = vmatpush1.msra.mxu0 %v971
        %1049 = vmatprep.subr.mxu0 0.0
        %1050 = vmatpush1.msra.mxu0 %v972
        %1051 = vmatprep.subr.mxu0 0.0
        %1052 = vmatpush1.msra.mxu0 %v973
        %1053 = vmatprep.subr.mxu0 0.0
        %1054 = vmatpush1.msra.mxu0 %v974
        %1055 = vmatprep.subr.mxu0 0.0
        %1056 = vmatpush1.msra.mxu0 %v975
        %1057 = vmatprep.subr.mxu0 0.0
        %1058 = vmatpush1.msra.mxu0 %v976
        %1059 = vmatprep.subr.mxu0 0.0
        %1060 = vmatpush1.msra.mxu0 %v977
        %1061 = vmatprep.subr.mxu0 0.0
        %1062 = vmatpush1.msra.mxu0 %v978
        %1063 = vmatprep.subr.mxu0 0.0
        %1064 = vmatpush1.msra.mxu0 %v979
        %1065 = vmatprep.subr.mxu0 0.0
        %1066 = vmatpush1.msra.mxu0 %v980
        %1067 = vmatprep.subr.mxu0 0.0
        %1068 = vmatpush1.msra.mxu0 %v981
        %1069 = vmatprep.subr.mxu0 0.0
        %1070 = vmatpush1.msra.mxu0 %v982
        %1071 = vmatprep.subr.mxu0 0.0
        %1072 = vmatpush1.msra.mxu0 0.0
        %1073 = vmatprep.subr.mxu0 0.0
        %1074 = vmatpush1.msra.mxu0 0.0
        %1075 = vmatprep.subr.mxu0 0.0
        %1076 = vmatpush1.msra.mxu0 0.0
        %1077 = vmatprep.subr.mxu0 0.0
        %1078 = vmatpush1.msra.mxu0 0.0
        %1079 = vmatprep.subr.mxu0 0.0
        %1080 = vmatpush1.msra.mxu0 0.0
        %1081 = vmatprep.subr.mxu0 0.0
        %1082 = vmatpush1.msra.mxu0 0.0
        %1083 = vmatprep.subr.mxu0 0.0
        %1084 = vmatpush1.msra.mxu0 0.0
        %1085 = vmatprep.subr.mxu0 0.0
        %1086 = vmatpush1.msra.mxu0 0.0
        %1087 = vmatprep.subr.mxu0 0.0
        %1088 = vmatpush1.msra.mxu0 0.0
        %1089 = vmatprep.subr.mxu0 0.0
        %1090 = vmatpush1.msra.mxu0 0.0
        %1091 = vmatprep.subr.mxu0 0.0
        %1092 = vmatpush1.msra.mxu0 0.0
        %1093 = vmatprep.subr.mxu0 0.0
        %1094 = vmatpush1.msra.mxu0 0.0
        %1095 = vmatprep.subr.mxu0 0.0
        %1096 = vmatpush1.msra.mxu0 0.0
        %1097 = vmatprep.subr.mxu0 0.0
        %1098 = vmatpush1.msra.mxu0 0.0
        %1099 = vmatprep.subr.mxu0 0.0
        %1100 = vmatpush1.msra.mxu0 0.0
        %1101 = vmatprep.subr.mxu0 0.0
        %1102 = vmatpush1.msra.mxu0 0.0
        %1103 = vmatprep.mubr.f32.mxu0 0.0
        %1104 = vmatmul.mubr.f32.gmra.mrb[0].mxu0 %v983
        %v1105 = vpop.f32.mrb[0].mxu0
        %v1106 = vadd.f32 %v1002, %v1105
        %v1107 = vpop.f32.mrb[0].mxu0
        %1108 = vmatprep.mubr.f32.mxu0 0.0
        %1109 = vmatmul.mubr.f32.gmra.mrb[0].mxu0 %v984
        %v1110 = vpop.f32.mrb[0].mxu0
        %v1111 = vadd.f32 %v1007, %v1110
        %v1112 = vpop.f32.mrb[0].mxu0
        %1113 = vmatprep.mubr.f32.mxu0 0.0
        %1114 = vmatmul.mubr.f32.gmra.mrb[0].mxu0 %v985
        %v1115 = vpop.f32.mrb[0].mxu0
        %v1116 = vadd.f32 %v1012, %v1115
        %v1117 = vpop.f32.mrb[0].mxu0
        %1118 = vmatprep.mubr.f32.mxu0 0.0
        %1119 = vmatmul.mubr.f32.gmra.mrb[0].mxu0 %v986
        %v1120 = vpop.f32.mrb[0].mxu0
        %v1121 = vadd.f32 %v1017, %v1120
        %v1122 = vpop.f32.mrb[0].mxu0
        %1123 = vmatprep.mubr.f32.mxu0 0.0
        %1124 = vmatmul.mubr.f32.gmra.mrb[0].mxu0 %v987
        %v1125 = vpop.f32.mrb[0].mxu0
        %v1126 = vadd.f32 %v1022, %v1125
        %v1127 = vpop.f32.mrb[0].mxu0
        %1128 = vmatprep.mubr.f32.mxu0 0.0
        %1129 = vmatmul.mubr.f32.gmra.mrb[0].mxu0 %v988
        %v1130 = vpop.f32.mrb[0].mxu0
        %v1131 = vadd.f32 %v1027, %v1130
        %v1132 = vpop.f32.mrb[0].mxu0
        %1133 = vmatprep.mubr.f32.mxu0 0.0
        %1134 = vmatmul.mubr.f32.gmra.mrb[0].mxu0 %v989
        %v1135 = vpop.f32.mrb[0].mxu0
        %v1136 = vadd.f32 %v1032, %v1135
        %v1137 = vpop.f32.mrb[0].mxu0
        %1138 = vmatprep.mubr.f32.mxu0 0.0
        %1139 = vmatmul.mubr.f32.gmra.mrb[0].mxu0 %v990
        %v1140 = vpop.f32.mrb[0].mxu0
        %v1141 = vadd.f32 %v1037, %v1140
        %v1142 = vpop.f32.mrb[0].mxu0
        %1143 = vdwg.mxu0
        %v1144 = vmax.f32 %v1106, 0.0
        %v1145 = vmax.f32 %v1111, 0.0
        %v1146 = vmax.f32 %v1116, 0.0
        %v1147 = vmax.f32 %v1121, 0.0
        %v1148 = vmax.f32 %v1126, 0.0
        %v1149 = vmax.f32 %v1131, 0.0
        %v1150 = vmax.f32 %v1136, 0.0
        %v1151 = vmax.f32 %v1141, 0.0
        %v1152 = vld [vmem:[%s7] sm:$0xff]
        %v1153 = vld [vmem:[%s7 + $0x8] sm:$0xff]
        %v1154 = vld [vmem:[%s7 + $0x10] sm:$0xff]
        %v1155 = vld [vmem:[%s7 + $0x18] sm:$0xff]
        %v1156 = vld [vmem:[%s8] sm:$0xff]
        %v1157 = vld [vmem:[%s8 + $0x8] sm:$0xff]
        %v1158 = vld [vmem:[%s8 + $0x10] sm:$0xff]
        %v1159 = vld [vmem:[%s8 + $0x18] sm:$0xff]
        %1161 = vset.pattern.permute.xlu0 0
        %1162 = vperm.xlu0 %1161, %v1156
        %v1163 = vpop.permute.xlu0 %1162
        %1166 = vset.pattern.permute.xlu0 0
        %1167 = vperm.xlu0 %1166, %v1157
        %v1168 = vpop.permute.xlu0 %1167
        %1171 = vset.pattern.permute.xlu0 0
        %1172 = vperm.xlu0 %1171, %v1158
        %v1173 = vpop.permute.xlu0 %1172
        %1176 = vset.pattern.permute.xlu0 0
        %1177 = vperm.xlu0 %1176, %v1159
        %v1178 = vpop.permute.xlu0 %1177
        %vm1180 = vcmask 523264
        %v1182 = vsel %vm1180, %v1152, 0
        %v1185 = vsel %vm1180, %v1153, 0
        %v1188 = vsel %vm1180, %v1154, 0
        %v1191 = vsel %vm1180, %v1155, 0
        %1193 = vmatprep.subr.mxu0 0.0
        %1194 = vmatpush1.msra.mxu0 %v1144
        %1195 = vmatprep.subr.mxu0 0.0
        %1196 = vmatpush1.msra.mxu0 %v1145
        %1197 = vmatprep.subr.mxu0 0.0
        %1198 = vmatpush1.msra.mxu0 %v1146
        %1199 = vmatprep.subr.mxu0 0.0
        %1200 = vmatpush1.msra.mxu0 %v1147
        %1201 = vmatprep.subr.mxu0 0.0
        %1202 = vmatpush1.msra.mxu0 %v1148
        %1203 = vmatprep.subr.mxu0 0.0
        %1204 = vmatpush1.msra.mxu0 %v1149
        %1205 = vmatprep.subr.mxu0 0.0
        %1206 = vmatpush1.msra.mxu0 %v1150
        %1207 = vmatprep.subr.mxu0 0.0
        %1208 = vmatpush1.msra.mxu0 %v1151
        %1209 = vmatprep.subr.mxu0 0.0
        %1210 = vmatpush1.msra.mxu0 0.0
        %1211 = vmatprep.subr.mxu0 0.0
        %1212 = vmatpush1.msra.mxu0 0.0
        %1213 = vmatprep.subr.mxu0 0.0
        %1214 = vmatpush1.msra.mxu0 0.0
        %1215 = vmatprep.subr.mxu0 0.0
        %1216 = vmatpush1.msra.mxu0 0.0
        %1217 = vmatprep.subr.mxu0 0.0
        %1218 = vmatpush1.msra.mxu0 0.0
        %1219 = vmatprep.subr.mxu0 0.0
        %1220 = vmatpush1.msra.mxu0 0.0
        %1221 = vmatprep.subr.mxu0 0.0
        %1222 = vmatpush1.msra.mxu0 0.0
        %1223 = vmatprep.subr.mxu0 0.0
        %1224 = vmatpush1.msra.mxu0 0.0
        %1225 = vmatprep.subr.mxu0 0.0
        %1226 = vmatpush1.msra.mxu0 0.0
        %1227 = vmatprep.subr.mxu0 0.0
        %1228 = vmatpush1.msra.mxu0 0.0
        %1229 = vmatprep.subr.mxu0 0.0
        %1230 = vmatpush1.msra.mxu0 0.0
        %1231 = vmatprep.subr.mxu0 0.0
        %1232 = vmatpush1.msra.mxu0 0.0
        %1233 = vmatprep.subr.mxu0 0.0
        %1234 = vmatpush1.msra.mxu0 0.0
        %1235 = vmatprep.subr.mxu0 0.0
        %1236 = vmatpush1.msra.mxu0 0.0
        %1237 = vmatprep.subr.mxu0 0.0
        %1238 = vmatpush1.msra.mxu0 0.0
        %1239 = vmatprep.subr.mxu0 0.0
        %1240 = vmatpush1.msra.mxu0 0.0
        %1241 = vmatprep.subr.mxu0 0.0
        %1242 = vmatpush1.msra.mxu0 0.0
        %1243 = vmatprep.subr.mxu0 0.0
        %1244 = vmatpush1.msra.mxu0 0.0
        %1245 = vmatprep.subr.mxu0 0.0
        %1246 = vmatpush1.msra.mxu0 0.0
        %1247 = vmatprep.subr.mxu0 0.0
        %1248 = vmatpush1.msra.mxu0 0.0
        %1249 = vmatprep.subr.mxu0 0.0
        %1250 = vmatpush1.msra.mxu0 0.0
        %1251 = vmatprep.subr.mxu0 0.0
        %1252 = vmatpush1.msra.mxu0 0.0
        %1253 = vmatprep.subr.mxu0 0.0
        %1254 = vmatpush1.msra.mxu0 0.0
        %1255 = vmatprep.subr.mxu0 0.0
        %1256 = vmatpush1.msra.mxu0 0.0
        %1257 = vmatprep.mubr.f32.mxu0 0.0
        %1258 = vmatmul.mubr.f32.gmra.mrb[0].mxu0 %v1182
        %v1259 = vpop.f32.mrb[0].mxu0
        %v1260 = vadd.f32 %v1163, %v1259
        %v1261 = vpop.f32.mrb[0].mxu0
        %1262 = vmatprep.mubr.f32.mxu0 0.0
        %1263 = vmatmul.mubr.f32.gmra.mrb[0].mxu0 %v1185
        %v1264 = vpop.f32.mrb[0].mxu0
        %v1265 = vadd.f32 %v1168, %v1264
        %v1266 = vpop.f32.mrb[0].mxu0
        %1267 = vmatprep.mubr.f32.mxu0 0.0
        %1268 = vmatmul.mubr.f32.gmra.mrb[0].mxu0 %v1188
        %v1269 = vpop.f32.mrb[0].mxu0
        %v1270 = vadd.f32 %v1173, %v1269
        %v1271 = vpop.f32.mrb[0].mxu0
        %1272 = vmatprep.mubr.f32.mxu0 0.0
        %1273 = vmatmul.mubr.f32.gmra.mrb[0].mxu0 %v1191
        %v1274 = vpop.f32.mrb[0].mxu0
        %v1275 = vadd.f32 %v1178, %v1274
        %v1276 = vpop.f32.mrb[0].mxu0
        %1277 = vdwg.mxu0
        %v1278 = vmax.f32 %v1260, 0.0
        %v1279 = vmax.f32 %v1265, 0.0
        %v1280 = vmax.f32 %v1270, 0.0
        %v1281 = vmax.f32 %v1275, 0.0
        %v1282 = vld [vmem:[%s9] sm:$0xff]
        %v1283 = vld [vmem:[%s9 + $0x8] sm:$0xff]
        %v1284 = vld [vmem:[%s9 + $0x10] sm:$0xff]
        %v1285 = vld [vmem:[%s9 + $0x18] sm:$0xff]
        %1287 = vset.pattern.permute.xlu0 0
        %1288 = vperm.xlu0 %1287, %v1282
        %v1289 = vpop.permute.xlu0 %1288
        %1292 = vset.pattern.permute.xlu0 0
        %1293 = vperm.xlu0 %1292, %v1283
        %v1294 = vpop.permute.xlu0 %1293
        %1297 = vset.pattern.permute.xlu0 0
        %1298 = vperm.xlu0 %1297, %v1284
        %v1299 = vpop.permute.xlu0 %1298
        %1302 = vset.pattern.permute.xlu0 0
        %1303 = vperm.xlu0 %1302, %v1285
        %v1304 = vpop.permute.xlu0 %1303
        %v1306 = vmul.f32 %v1278, %v1289
        %v1307 = vmul.f32 %v1279, %v1294
        %v1308 = vmul.f32 %v1280, %v1299
        %v1309 = vmul.f32 %v1281, %v1304
        %v1310 = vadd.f32 %v1306, %v1307
        %v1311 = vadd.f32 %v1310, %v1308
        %v1312 = vadd.f32 %v1311, %v1309
        %v1313 = vrot.slane %v1312, 4
        %v1314 = vadd.f32 %v1312, %v1313
        %v1315 = vrot.slane %v1314, 2
        %v1316 = vadd.f32 %v1314, %v1315
        %v1317 = vrot.slane %v1316, 1
        %v1318 = vadd.f32 %v1316, %v1317
        %v1319 = vld [vmem:[#allocation2] sm:$0x1]
        %1321 = vset.pattern.permute.xlu0 0
        %1322 = vperm.xlu0 %1321, %v1319
        %v1323 = vpop.permute.xlu0 %1322
        %v1325 = vlaneseq
        %v1326 = vshrl.u32 %v1325, 7
        %v1327 = vsub.s32 0, %v1326
        %v1328 = vrot.slane %v1323, %v1327
        %v1329 = vadd.f32 %v1318, %v1328
        %1330 = vst [vmem:[%s378] sm:$0x1] %v1329
        %s1331 = sand.u32 %s271, 1
        %s1332 = scalar_lea.sflag [#allocation4], %s1331
        %s1333 = sand.u32 %s271, 1
        %s1334 = scalar_lea.vmem [#allocation3], %s1333
        // Predicated region
        $region65: #{tpu_custom_call.1} parent=63 // pred_check
          %p1335 = pneg %p281
        $region66: #{tpu_custom_call.1} parent=63 // pred_check_branch
          %1337 = sbr.rel (%p1335) target = $region68
        $region67: #{tpu_custom_call.1} parent=63 // pred_region
          %s1339 = ssub.s32 16, 16
          %1340 = vsyncadd %s1332, %s1339
          %s1341 = smul.addr %s27, 16
          %s1342 = scalar_lea.hbm %s11, %s1341
          %s1344 = sshll.u32 %s1334, 4
          %s1345 = int_to_ptr.vmem [resolvable:$true] %s1344
          %1347 = dma.vmem_to_hbm [thread:$0]  %s1345, 16, %s1342, %s1332
        $region68: #{tpu_custom_call.1} parent=63 // pred_fallthru
          _
      $region64: #{tpu_custom_call.1} parent=5 // pred_fallthru
        _
      %p1348 = scmp.le.s32.totalorder 2, %s22
      // Predicated region
      $region69: #{tpu_custom_call.1} parent=5 // pred_check
        %p1349 = pneg %p1348
      $region70: #{tpu_custom_call.1} parent=5 // pred_check_branch
        %1351 = sbr.rel (%p1349) target = $region72
      $region71: #{tpu_custom_call.1} parent=5 // pred_region
        %s1352 = ssub.s32 %s22, 2
        // Predicated region
        $region73: #{tpu_custom_call.1} parent=71 // pred_check
          %p1353 = pneg %p287
        $region74: #{tpu_custom_call.1} parent=71 // pred_check_branch
          %1355 = sbr.rel (%p1353) target = $region76
        $region75: #{tpu_custom_call.1} parent=71 // pred_region
          %s1356 = sand.u32 %s272, 1
          %s1357 = scalar_lea.sflag [#allocation4], %s1356
          %s1358 = sand.u32 %s272, 1
          %s1359 = scalar_lea.vmem [#allocation3], %s1358
          %1360 = dma.done %s1357, 16
        $region76: #{tpu_custom_call.1} parent=71 // pred_fallthru
          _
      $region72: #{tpu_custom_call.1} parent=5 // pred_fallthru
        _
    $region6: #{tpu_custom_call.1} parent=1 // loop_footer
      %s26 = sadd.s32 1, %s22
    $region7: #{tpu_custom_call.1} parent=1 // loop_footer_branch
      %21 = sbr.rel target = $region3
    $region8: #{tpu_custom_call.1} parent=1 // loop_exit
      _
    %1361 = vsyncpa [#allocation4], 1
    %s1362 = scalar_lea.sflag [#allocation4], 1
    %1363 = vsyncpa %s1362, 1

</llo_original>
